<compile_context>
chip_gen: v6e
topology: v6e:2x2x1
jax: 0.10.0
libtpu: 0.0.40
codegen_flags: <defaults>
</compile_context>

<pallas_src>
import jax
import jax.numpy as jnp
from jax import lax
from jax.experimental import pallas as pl
from jax.experimental.pallas import tpu as pltpu


# ---------------------------------------------------------------------------
# Tile selection helpers
# ---------------------------------------------------------------------------

_TINY_WORK = 8 * 128 * 128  # below ~one (8,128)x(128,128) tile of work -> jnp


def _round_up(a, b):
    return (a + b - 1) // b * b


def _tile_prefs():
    """Per-generation preferred (tm, tn, tk) tile sizes (f32)."""
    try:
        kind = jax.devices()[0].device_kind.lower()
    except Exception:  # pragma: no cover - defensive
        kind = ""
    if "v5 lite" in kind or "v5e" in kind or "v5litepod" in kind:
        # v5e: only 16 MiB default scoped VMEM -> keep double-buffered tiles small.
        return 256, 256, 256
    if "v6" in kind or "trillium" in kind:
        # v6e: 128 MiB VMEM; bigger tiles amortize the ~0.35 us per-grid-step cost.
        return 512, 512, 512
    # v7x (64 MiB VMEM) and unknown chips: moderate, safe everywhere.
    return 256, 256, 512


def _choose_tile(dim, pref, align):
    """Largest tile <= pref that is (a) a multiple of `align` and (b) divides the
    padded dimension.  Returns (tile, padded_dim)."""
    padded = _round_up(dim, align)
    if padded <= pref:
        return padded, padded
    for t in range(pref, align - 1, -align):
        if padded % t == 0:
            return t, padded
    t = pref
    return t, _round_up(padded, t)


def _pad2(x, rows, cols):
    r, c = x.shape
    if r == rows and c == cols:
        return x
    return jnp.pad(x, ((0, rows - r), (0, cols - c)))


# ---------------------------------------------------------------------------
# Kernels
# ---------------------------------------------------------------------------

def _matmul_nn_kernel(x_ref, w_ref, o_ref, acc_ref):
    """o = x @ w; grid = (M/tm, N/tn, K/tk), K is the reduction axis."""
    @pl.when(pl.program_id(2) == 0)
    def _init():
        acc_ref[...] = jnp.zeros_like(acc_ref)

    acc_ref[...] += jnp.dot(
        x_ref[...], w_ref[...], preferred_element_type=jnp.float32
    )

    @pl.when(pl.program_id(2) == pl.num_programs(2) - 1)
    def _store():
        o_ref[...] = acc_ref[...].astype(o_ref.dtype)


def _matmul_nt_kernel(x_ref, a_ref, o_ref, acc_ref):
    """o = x @ a^T without materializing a transpose: contract both last dims."""
    @pl.when(pl.program_id(2) == 0)
    def _init():
        acc_ref[...] = jnp.zeros_like(acc_ref)

    acc_ref[...] += lax.dot_general(
        x_ref[...], a_ref[...],
        dimension_numbers=(((1,), (1,)), ((), ())),
        preferred_element_type=jnp.float32,
    )

    @pl.when(pl.program_id(2) == pl.num_programs(2) - 1)
    def _store():
        o_ref[...] = acc_ref[...].astype(o_ref.dtype)


def _gramian_kernel(x_ref, a_ref, o_ref, acc_ref):
    """Fused z = x @ A^T @ A.

    Grid = (M/tm, out/tc); for each out-chunk c:
      y_c = x_tile @ A_c^T   (stays in registers/VMEM, never hits HBM)
      acc += y_c @ A_c
    """
    c = pl.program_id(1)

    @pl.when(c == 0)
    def _init():
        acc_ref[...] = jnp.zeros_like(acc_ref)

    y = lax.dot_general(
        x_ref[...], a_ref[...],
        dimension_numbers=(((1,), (1,)), ((), ())),
        preferred_element_type=jnp.float32,
    )  # (tm, tc)
    acc_ref[...] += jnp.dot(
        y.astype(a_ref.dtype), a_ref[...], preferred_element_type=jnp.float32
    )  # (tm, in)

    @pl.when(c == pl.num_programs(1) - 1)
    def _store():
        o_ref[...] = acc_ref[...].astype(o_ref.dtype)


# ---------------------------------------------------------------------------
# Wrappers
# ---------------------------------------------------------------------------

def _tiled_matmul(x, a, transpose_rhs):
    """x @ a (transpose_rhs=False) or x @ a^T (transpose_rhs=True)."""
    M, K = x.shape
    if transpose_rhs:
        N, K2 = a.shape
    else:
        K2, N = a.shape
    assert K == K2, (x.shape, a.shape)

    if M * N * K <= _TINY_WORK:
        # Kernel launch overhead dwarfs this much work; let XLA fuse it.
        if transpose_rhs:
            out = lax.dot_general(
                x, a, dimension_numbers=(((1,), (1,)), ((), ())),
                preferred_element_type=jnp.float32)
        else:
            out = jnp.dot(x, a, preferred_element_type=jnp.float32)
        return out.astype(x.dtype)

    tm_pref, tn_pref, tk_pref = _tile_prefs()
    tm, Mp = _choose_tile(M, tm_pref, 8)
    tn, Np = _choose_tile(N, tn_pref, 128)
    tk, Kp = _choose_tile(K, tk_pref, 128)

    xp = _pad2(x, Mp, Kp)
    if transpose_rhs:
        ap = _pad2(a, Np, Kp)
        kernel = _matmul_nt_kernel
        rhs_spec = pl.BlockSpec((tn, tk), lambda i, j, k: (j, k))
    else:
        ap = _pad2(a, Kp, Np)
        kernel = _matmul_nn_kernel
        rhs_spec = pl.BlockSpec((tk, tn), lambda i, j, k: (k, j))

    itemsize = x.dtype.itemsize
    cost = pl.CostEstimate(
        flops=2 * Mp * Np * Kp,
        transcendentals=0,
        bytes_accessed=(Mp * Kp + Kp * Np + Mp * Np) * itemsize,
    )

    out = pl.pallas_call(
        kernel,
        out_shape=jax.ShapeDtypeStruct((Mp, Np), x.dtype),
        grid_spec=pltpu.PrefetchScalarGridSpec(
            num_scalar_prefetch=0,
            grid=(Mp // tm, Np // tn, Kp // tk),
            in_specs=[
                pl.BlockSpec((tm, tk), lambda i, j, k: (i, k)),
                rhs_spec,
            ],
            out_specs=pl.BlockSpec((tm, tn), lambda i, j, k: (i, j)),
            scratch_shapes=[pltpu.VMEM((tm, tn), jnp.float32)],
        ),
        compiler_params=pltpu.CompilerParams(
            dimension_semantics=("parallel", "parallel", "arbitrary"),
        ),
        cost_estimate=cost,
    )(xp, ap)

    if Mp != M or Np != N:
        out = out[:M, :N]
    return out


def _fused_gramian(x, a):
    """z = x @ a^T @ a in a single pallas_call (intermediate stays in VMEM)."""
    M, K = x.shape          # K = in_features
    N, K2 = a.shape         # N = out_features
    assert K == K2

    if M * N * K <= _TINY_WORK:
        y = lax.dot_general(x, a, dimension_numbers=(((1,), (1,)), ((), ())),
                            preferred_element_type=jnp.float32)
        return jnp.dot(y.astype(x.dtype), a,
                       preferred_element_type=jnp.float32).astype(x.dtype)

    tm_pref, _, _ = _tile_prefs()
    tm, Mp = _choose_tile(M, tm_pref, 8)
    tc, Np = _choose_tile(N, 256, 128)      # out-dimension chunk (reduction axis)
    Kp = _round_up(K, 128)                  # full in_features width per block

    itemsize = x.dtype.itemsize
    # x block + out block + A chunk (double buffered) + f32 accumulator.
    vmem_est = (2 * tm * Kp + 2 * tm * Kp + 2 * tc * Kp) * itemsize + tm * Kp * 4
    if vmem_est > 12 * 1024 * 1024:
        # in_features too wide to keep a (tm, in) accumulator resident in VMEM
        # on every generation -> fall back to the two tiled kernels.
        return _tiled_matmul(_tiled_matmul(x, a, transpose_rhs=True), a,
                             transpose_rhs=False)

    xp = _pad2(x, Mp, Kp)
    ap = _pad2(a, Np, Kp)

    cost = pl.CostEstimate(
        flops=4 * Mp * Np * Kp,
        transcendentals=0,
        bytes_accessed=(Mp * Kp + Np * Kp + Mp * Kp) * itemsize,
    )

    out = pl.pallas_call(
        _gramian_kernel,
        out_shape=jax.ShapeDtypeStruct((Mp, Kp), x.dtype),
        grid_spec=pltpu.PrefetchScalarGridSpec(
            num_scalar_prefetch=0,
            grid=(Mp // tm, Np // tc),
            in_specs=[
                pl.BlockSpec((tm, Kp), lambda i, c: (i, 0)),
                pl.BlockSpec((tc, Kp), lambda i, c: (c, 0)),
            ],
            out_specs=pl.BlockSpec((tm, Kp), lambda i, c: (i, 0)),
            scratch_shapes=[pltpu.VMEM((tm, Kp), jnp.float32)],
        ),
        compiler_params=pltpu.CompilerParams(
            dimension_semantics=("parallel", "arbitrary"),
        ),
        cost_estimate=cost,
    )(xp, ap)

    if Mp != M or Kp != K:
        out = out[:M, :K]
    return out


# ---------------------------------------------------------------------------
# Module
# ---------------------------------------------------------------------------

class LinearOperator:
    """Concrete linear operator y = A x (batched over rows of x)."""

    def __init__(self, A):
        # A: (out_features, in_features).  Never transposed in HBM; the
        # forward/gramian kernels contract on A's last dim directly.
        self.A = A

    def forward(self, x):
        # (batch, in_features) -> (batch, out_features) = x @ A^T
        return _tiled_matmul(x, self.A, transpose_rhs=True)

    def adjoint(self, y):
        # (batch, out_features) -> (batch, in_features) = y @ A
        return _tiled_matmul(y, self.A, transpose_rhs=False)

    def gramian(self, x):
        # adjoint(forward(x)) = x @ A^T @ A, fused into one kernel.
        return _fused_gramian(x, self.A)


# ---------------------------------------------------------------------------
# Demo / self-test
# ---------------------------------------------------------------------------

if __name__ == "__main__":
    key = jax.random.PRNGKey(0)
    k_a, k_x = jax.random.split(key)

    # Big enough to take the tiled Pallas path (multi-tile grid), still tiny
    # in absolute terms.
    batch, in_features, out_features = 128, 256, 384
    A = jax.random.normal(k_a, (out_features, in_features), dtype=jnp.float32)
    x = jax.random.normal(k_x, (batch, in_features), dtype=jnp.float32)

    op = LinearOperator(A)

    y = op.forward(x)          # (128, 384)
    z = op.adjoint(y)          # (128, 256)
    g = op.gramian(x)          # (128, 256)  fused kernel
    jax.block_until_ready((y, z, g))

    # Reference in full f32 precision.
    hp = jax.lax.Precision.HIGHEST
    y_ref = jnp.dot(x, A.T, precision=hp)
    g_ref = jnp.dot(y_ref, A, precision=hp)

    def _rel_err(a, b):
        return float(jnp.max(jnp.abs(a - b)) / (jnp.max(jnp.abs(b)) + 1e-6))

    assert y.shape == (batch, out_features)
    assert z.shape == (batch, in_features)
    assert g.shape == (batch, in_features)
    assert _rel_err(y, y_ref) < 1e-2, _rel_err(y, y_ref)
    assert _rel_err(z, g_ref) < 1e-2, _rel_err(z, g_ref)
    assert _rel_err(g, g_ref) < 1e-2, _rel_err(g, g_ref)

    print("KERNEL_OK")
</pallas_src>

<mosaic_0001>
module attributes {stable_mosaic.version = 11 : i64} {
  func.func @_matmul_nt_kernel(%arg0: i32, %arg1: i32, %arg2: i32, %arg3: memref<128x256xf32, #tpu.memory_space<vmem>>, %arg4: memref<128x256xf32, #tpu.memory_space<vmem>>, %arg5: memref<128x128xf32, #tpu.memory_space<vmem>>, %arg6: memref<128x128xf32, #tpu.memory_space<vmem>>) attributes {dimension_semantics = [#tpu.dimension_semantics<parallel>, #tpu.dimension_semantics<parallel>, #tpu.dimension_semantics<arbitrary>], iteration_bounds = array<i64: 1, 3, 1>, scalar_prefetch = 0 : i64, scratch_operands = 1 : i64, tpu.core_type = #tpu.core_type<tc>, window_params = [{transform_indices = @transform_0, window_bounds = array<i64: 128, 256>}, {transform_indices = @transform_1, window_bounds = array<i64: 128, 256>}, {transform_indices = @transform_2, window_bounds = array<i64: 128, 128>}]} {
    %c0_i32 = arith.constant 0 : i32
    %0 = arith.cmpi eq, %arg2, %c0_i32 : i32
    %1 = arith.extui %0 : i1 to i32
    %c0_i32_0 = arith.constant 0 : i32
    %2 = arith.cmpi ne, %1, %c0_i32_0 : i32
    scf.if %2 {
      %cst_10 = arith.constant 0.000000e+00 : f32
      %12 = vector.broadcast %cst_10 : f32 to vector<128x128xf32>
      %c0_11 = arith.constant 0 : index
      %c0_12 = arith.constant 0 : index
      %13 = vector.load %arg6[%c0_11, %c0_12] : memref<128x128xf32, #tpu.memory_space<vmem>>, vector<128x128xf32>
      tpu.vector_store %arg6[%c0_11, %c0_12], %12 {strides = array<i32>} : memref<128x128xf32, #tpu.memory_space<vmem>>, vector<128x128xf32>,
    } else {
    }
    %c0 = arith.constant 0 : index
    %c0_1 = arith.constant 0 : index
    %3 = vector.load %arg6[%c0, %c0_1] : memref<128x128xf32, #tpu.memory_space<vmem>>, vector<128x128xf32>
    %c0_2 = arith.constant 0 : index
    %c0_3 = arith.constant 0 : index
    %4 = vector.load %arg3[%c0_2, %c0_3] : memref<128x256xf32, #tpu.memory_space<vmem>>, vector<128x256xf32>
    %c0_4 = arith.constant 0 : index
    %c0_5 = arith.constant 0 : index
    %5 = vector.load %arg4[%c0_4, %c0_5] : memref<128x256xf32, #tpu.memory_space<vmem>>, vector<128x256xf32>
    %cst = arith.constant dense<0.000000e+00> : vector<128x128xf32>
    %6 = tpu.matmul %4, %5, %cst {dimension_numbers = #tpu.dot_dimension_numbers<[1], [1], [0], [0], [0, 0, 1, 0], [], []>} : vector<128x256xf32>, vector<128x256xf32>, vector<128x128xf32> -> vector<128x128xf32>
    %7 = arith.addf %3, %6 : vector<128x128xf32>
    %c0_6 = arith.constant 0 : index
    %c0_7 = arith.constant 0 : index
    %8 = vector.load %arg6[%c0_6, %c0_7] : memref<128x128xf32, #tpu.memory_space<vmem>>, vector<128x128xf32>
    tpu.vector_store %arg6[%c0_6, %c0_7], %7 {strides = array<i32>} : memref<128x128xf32, #tpu.memory_space<vmem>>, vector<128x128xf32>,
    %c0_i32_8 = arith.constant 0 : i32
    %9 = arith.cmpi eq, %arg2, %c0_i32_8 : i32
    %10 = arith.extui %9 : i1 to i32
    %c0_i32_9 = arith.constant 0 : i32
    %11 = arith.cmpi ne, %10, %c0_i32_9 : i32
    scf.if %11 {
      %c0_10 = arith.constant 0 : index
      %c0_11 = arith.constant 0 : index
      %12 = vector.load %arg6[%c0_10, %c0_11] : memref<128x128xf32, #tpu.memory_space<vmem>>, vector<128x128xf32>
      %c0_12 = arith.constant 0 : index
      %c0_13 = arith.constant 0 : index
      %13 = vector.load %arg5[%c0_12, %c0_13] : memref<128x128xf32, #tpu.memory_space<vmem>>, vector<128x128xf32>
      tpu.vector_store %arg5[%c0_12, %c0_13], %12 {strides = array<i32>} : memref<128x128xf32, #tpu.memory_space<vmem>>, vector<128x128xf32>,
    } else {
    }
    return
  }
  func.func @transform_0(%arg0: i32, %arg1: i32, %arg2: i32) -> (i32, i32) {
    %c0_i32 = arith.constant 0 : i32
    return %arg0, %arg2 : i32, i32
  }
  func.func @transform_1(%arg0: i32, %arg1: i32, %arg2: i32) -> (i32, i32) {
    %c0_i32 = arith.constant 0 : i32
    return %arg1, %arg2 : i32, i32
  }
  func.func @transform_2(%arg0: i32, %arg1: i32, %arg2: i32) -> (i32, i32) {
    %c0_i32 = arith.constant 0 : i32
    return %arg0, %arg1 : i32, i32
  }
}

</mosaic_0001>

<llo_original>
// kernel: tpu_custom_call.1
$region0: #{tpu_custom_call.1}
  #allocation0 [shape = 'u32[]', space=smem, size = 0x4, offset = 0x4, fixed_abs, tag = 'smem constant byte address 0x4 - core index']
  #allocation1 [shape = 'u32[144,128]{1,0:T(1,128)}', space=vmem, size = 0x12000, scoped, tag = 'internal scratch']
  #allocation2 [shape = 'f32[128,128]{1,0:T(8,128)}', space=vmem, size = 0x10000, scoped, tag = 'scratch operand']
  %s0 = inlined_call_operand.hbm [shape: f32[128,256], index: 0, kind: input, shape index: {}]
  %s1 = inlined_call_operand.hbm [shape: f32[384,256], index: 1, kind: input, shape index: {}]
  %s2 = inlined_call_operand.hbm [shape: f32[128,384], index: 2, kind: output, shape index: {}]
  %s3 = sld [smem:[#allocation0]]
  $region57: #{tpu_custom_call.1} parent=0
    _
  %s5 = ssub.s32 1, %s3
  %s6 = scalar_select 0, %s5, %s3
  $region1: #{tpu_custom_call.1} parent=0
    #allocation3 [shape = 'u8[131072]{0}', space=vmem, size = 0x20000, scoped, tag = 'input window, operand 0, single buffered']
    #allocation4 [shape = 's32[2]{0}', space=sflag, size = 0x8, scoped, tag = 'scoped memory for tpu_custom_call.1']
    #allocation5 [shape = 's32[2]{0}', space=sflag, size = 0x8, scoped, tag = 'scoped memory for tpu_custom_call.1']
    #allocation6 [shape = 'u8[262144]{0}', space=vmem, size = 0x40000, scoped, tag = 'input window, operand 1']
    #allocation7 [shape = 's32[2]{0}', space=sflag, size = 0x8, scoped, tag = 'scoped memory for tpu_custom_call.1']
    #allocation8 [shape = 'u8[131072]{0}', space=vmem, size = 0x20000, scoped, tag = 'output window, operand 0']
    %7 = vsyncpa [#allocation4], 0
    %8 = vsyncpa [#allocation7], 0
    %s9 = scalar_lea.sflag [#allocation7], 1
    %10 = vsyncpa %s9, 0
    %11 = vsyncpa [#allocation5], 0
    %s12 = scalar_lea.sflag [#allocation5], 1
    %13 = vsyncpa %s12, 0
    loop: start=0, step=1, limit=5
    $region2: #{tpu_custom_call.1} parent=1 // loop_pre_header
      _
    $region3: #{tpu_custom_call.1} parent=1 // loop_header
      %s15 = sphi 0, %s19
      %p16 = scmp.ge.s32.totalorder %s15, 5
      %s22 = sphi 0, %s41
      %s23 = sphi 0, %s37
      %s24 = sphi 0, %s33
      %s25 = sphi 0, %s22
      %s26 = sphi 0, %s23
      %s27 = sphi 0, %s24
      %s28 = sphi 0, %s25
      %s29 = sphi 0, %s26
      %s30 = sphi 0, %s27
      %s46 = sphi 0, %s48
      %s49 = sphi 0, %s46
      %s50 = sphi 0, %s49
      %s66 = sphi 0, %s50
      %s74 = sphi 0, %s76
      %s77 = sphi 0, %s74
      %s78 = sphi 0, %s77
      %s94 = sphi 0, %s78
      %s102 = sphi 0, %s104
      %s105 = sphi 0, %s102
      %s106 = sphi 0, %s105
      %s122 = sphi 0, %s106
    $region4: #{tpu_custom_call.1} parent=1 // loop_header_branch
      %18 = sbr.rel (%p16) target = $region8
    $region5: #{tpu_custom_call.1} parent=1 // loop_body
      %s20 = ssub.s32 %s15, 1
      %s21 = ssub.s32 %s15, 2
      %s31 = sadd.s32 1, %s24
      %p32 = scmp.ge.s32.totalorder %s31, 1
      %s33 = scalar_select %p32, 0, %s31
      %s34 = sadd.s32 1, %s23
      %s35 = scalar_select %p32, %s34, %s23
      %p36 = scmp.ge.s32.totalorder %s35, 3
      %s37 = scalar_select %p36, 0, %s35
      %s38 = sadd.s32 1, %s22
      %s39 = scalar_select %p36, %s38, %s22
      %p40 = scmp.ge.s32.totalorder %s39, 1
      %s41 = scalar_select %p40, 0, %s39
      %s42 = ssub.s32 %s22, %s41
      %s43 = ssub.s32 %s24, %s33
      %s44 = sor.u32 %s42, %s43
      %p45 = scmp.eq.s32.totalorder %s44, 0
      %s47 = sadd.s32 %s46, 1
      %s48 = scalar_select %p45, %s46, %s47
      %p51 = pneg %p45
      %p52 = scmp.eq.s32.totalorder %s15, 2
      %p53 = por %p51, %p52
      %p54 = scmp.ne.s32.totalorder %s46, %s49
      %p55 = scmp.eq.s32.totalorder %s15, 0
      %p56 = por %p54, %p55
      %p57 = scmp.ne.s32.totalorder %s46, %s49
      %p58 = scmp.eq.s32.totalorder %s20, 2
      %p59 = por %p57, %p58
      %p60 = scmp.ne.s32.totalorder %s49, %s50
      %p61 = scmp.eq.s32.totalorder %s20, 0
      %p62 = por %p60, %p61
      %p63 = scmp.ne.s32.totalorder %s49, %s50
      %p64 = scmp.eq.s32.totalorder %s21, 2
      %p65 = por %p63, %p64
      %p67 = scmp.ne.s32.totalorder %s50, %s66
      %p68 = scmp.eq.s32.totalorder %s21, 0
      %p69 = por %p67, %p68
      %s70 = ssub.s32 %s23, %s37
      %s71 = ssub.s32 %s24, %s33
      %s72 = sor.u32 %s70, %s71
      %p73 = scmp.eq.s32.totalorder %s72, 0
      %s75 = sadd.s32 %s74, 1
      %s76 = scalar_select %p73, %s74, %s75
      %p79 = pneg %p73
      %p80 = scmp.eq.s32.totalorder %s15, 2
      %p81 = por %p79, %p80
      %p82 = scmp.ne.s32.totalorder %s74, %s77
      %p83 = scmp.eq.s32.totalorder %s15, 0
      %p84 = por %p82, %p83
      %p85 = scmp.ne.s32.totalorder %s74, %s77
      %p86 = scmp.eq.s32.totalorder %s20, 2
      %p87 = por %p85, %p86
      %p88 = scmp.ne.s32.totalorder %s77, %s78
      %p89 = scmp.eq.s32.totalorder %s20, 0
      %p90 = por %p88, %p89
      %p91 = scmp.ne.s32.totalorder %s77, %s78
      %p92 = scmp.eq.s32.totalorder %s21, 2
      %p93 = por %p91, %p92
      %p95 = scmp.ne.s32.totalorder %s78, %s94
      %p96 = scmp.eq.s32.totalorder %s21, 0
      %p97 = por %p95, %p96
      %s98 = ssub.s32 %s22, %s41
      %s99 = ssub.s32 %s23, %s37
      %s100 = sor.u32 %s98, %s99
      %p101 = scmp.eq.s32.totalorder %s100, 0
      %s103 = sadd.s32 %s102, 1
      %s104 = scalar_select %p101, %s102, %s103
      %p107 = pneg %p101
      %p108 = scmp.eq.s32.totalorder %s15, 2
      %p109 = por %p107, %p108
      %p110 = scmp.ne.s32.totalorder %s102, %s105
      %p111 = scmp.eq.s32.totalorder %s15, 0
      %p112 = por %p110, %p111
      %p113 = scmp.ne.s32.totalorder %s102, %s105
      %p114 = scmp.eq.s32.totalorder %s20, 2
      %p115 = por %p113, %p114
      %p116 = scmp.ne.s32.totalorder %s105, %s106
      %p117 = scmp.eq.s32.totalorder %s20, 0
      %p118 = por %p116, %p117
      %p119 = scmp.ne.s32.totalorder %s105, %s106
      %p120 = scmp.eq.s32.totalorder %s21, 2
      %p121 = por %p119, %p120
      %p123 = scmp.ne.s32.totalorder %s106, %s122
      %p124 = scmp.eq.s32.totalorder %s21, 0
      %p125 = por %p123, %p124
      %p126 = scmp.le.s32.totalorder 1, %s15
      %p127 = scmp.lt.s32.totalorder %s15, 4
      %p128 = pnand %p126, %p127
      %p129 = pneg %p128
      // Predicated region
      $region9: #{tpu_custom_call.1} parent=5 // pred_check
        _
      $region10: #{tpu_custom_call.1} parent=5 // pred_check_branch
        %131 = sbr.rel (%p128) target = $region12
      $region11: #{tpu_custom_call.1} parent=5 // pred_region
        %s132 = ssub.s32 %s15, 1
        // Predicated region
        $region13: #{tpu_custom_call.1} parent=11 // pred_check
          %p133 = pneg %p62
        $region14: #{tpu_custom_call.1} parent=11 // pred_check_branch
          %135 = sbr.rel (%p133) target = $region16
        $region15: #{tpu_custom_call.1} parent=11 // pred_region
          %s136 = smul.u32 16, %s25
          %s137 = smul.u32 2, %s27
          %s139 = ssub.s32 4096, 4096
          %140 = vsyncadd [#allocation4], %s139
          %s141 = smul.addr %s136, 2
          %s142 = sadd.s32 %s137, %s141
          %s143 = smul.addr %s142, 128
          %s144 = scalar_lea.hbm %s0, %s143
          %s145 = sshll.u32 [#allocation3], 4
          %s146 = int_to_ptr.vmem [resolvable:$true] %s145
          %151 = dma.hbm_to_vmem [thread:$0]  %s144, 4096, %s146, [#allocation4], 256, 256, 16
        $region16: #{tpu_custom_call.1} parent=11 // pred_fallthru
          _
      $region12: #{tpu_custom_call.1} parent=5 // pred_fallthru
        _
      %p152 = scmp.lt.s32.totalorder %s15, 3
      // Predicated region
      $region17: #{tpu_custom_call.1} parent=5 // pred_check
        %p153 = pneg %p152
      $region18: #{tpu_custom_call.1} parent=5 // pred_check_branch
        %155 = sbr.rel (%p153) target = $region20
      $region19: #{tpu_custom_call.1} parent=5 // pred_region
        // Predicated region
        $region21: #{tpu_custom_call.1} parent=19 // pred_check
          %p156 = pneg %p84
        $region22: #{tpu_custom_call.1} parent=19 // pred_check_branch
          %158 = sbr.rel (%p156) target = $region24
        $region23: #{tpu_custom_call.1} parent=19 // pred_region
          %s159 = sand.u32 %s74, 1
          %s160 = scalar_lea.sflag [#allocation7], %s159
          %s161 = sand.u32 %s74, 1
          %s162 = smul.addr %s161, 256
          %s163 = scalar_lea.vmem [#allocation6], %s162
          %s164 = smul.u32 16, %s23
          %s165 = smul.u32 2, %s24
          %s167 = ssub.s32 4096, 4096
          %168 = vsyncadd %s160, %s167
          %s169 = smul.addr %s164, 2
          %s170 = sadd.s32 %s165, %s169
          %s171 = smul.addr %s170, 128
          %s172 = scalar_lea.hbm %s1, %s171
          %s173 = sshll.u32 %s163, 4
          %s174 = int_to_ptr.vmem [resolvable:$true] %s173
          %179 = dma.hbm_to_vmem [thread:$0]  %s172, 4096, %s174, %s160, 256, 256, 16
        $region24: #{tpu_custom_call.1} parent=19 // pred_fallthru
          _
      $region20: #{tpu_custom_call.1} parent=5 // pred_fallthru
        _
      %p180 = scmp.le.s32.totalorder 1, %s15
      %p181 = scmp.lt.s32.totalorder %s15, 4
      %p182 = pnand %p180, %p181
      %p183 = pneg %p182
      // Predicated region
      $region25: #{tpu_custom_call.1} parent=5 // pred_check
        _
      $region26: #{tpu_custom_call.1} parent=5 // pred_check_branch
        %185 = sbr.rel (%p182) target = $region28
      $region27: #{tpu_custom_call.1} parent=5 // pred_region
        %s186 = ssub.s32 %s15, 1
        // Predicated region
        $region29: #{tpu_custom_call.1} parent=27 // pred_check
          %p187 = pneg %p62
        $region30: #{tpu_custom_call.1} parent=27 // pred_check_branch
          %189 = sbr.rel (%p187) target = $region32
        $region31: #{tpu_custom_call.1} parent=27 // pred_region
          %190 = dma.done [#allocation4], 4096
        $region32: #{tpu_custom_call.1} parent=27 // pred_fallthru
          _
        %s191 = sand.u32 %s77, 1
        %s192 = scalar_lea.sflag [#allocation7], %s191
        %s193 = sand.u32 %s77, 1
        %s194 = smul.addr %s193, 256
        %s195 = scalar_lea.vmem [#allocation6], %s194
        // Predicated region
        $region33: #{tpu_custom_call.1} parent=27 // pred_check
          %p196 = pneg %p90
        $region34: #{tpu_custom_call.1} parent=27 // pred_check_branch
          %198 = sbr.rel (%p196) target = $region36
        $region35: #{tpu_custom_call.1} parent=27 // pred_region
          %199 = dma.done %s192, 4096
        $region36: #{tpu_custom_call.1} parent=27 // pred_fallthru
          _
        %p200 = pneg %p62
        %p201 = pneg %p59
        %s202 = sand.u32 %s77, 1
        %s203 = scalar_lea.sflag [#allocation7], %s202
        %s204 = sand.u32 %s77, 1
        %s205 = smul.addr %s204, 256
        %s206 = scalar_lea.vmem [#allocation6], %s205
        %p207 = pneg %p90
        %p208 = pneg %p87
        %p209 = pneg %p118
        %p210 = pneg %p115
        %s211 = sand.u32 %s105, 1
        %s212 = scalar_lea.sflag [#allocation5], %s211
        %s213 = sand.u32 %s105, 1
        %s214 = smul.addr %s213, 128
        %s215 = scalar_lea.vmem [#allocation8], %s214
        %s216 = smul.u32 16, %s25
        %s217 = smul.u32 2, %s27
        %s218 = smul.u32 16, %s26
        %s219 = smul.u32 2, %s27
        %s220 = smul.u32 16, %s25
        %p221 = scmp.eq.s32.totalorder %s27, 0
        // Predicated region
        $region37: #{tpu_custom_call.1} parent=27 // pred_check
          %p222 = pneg %p221
        $region38: #{tpu_custom_call.1} parent=27 // pred_check_branch
          %224 = sbr.rel (%p222) target = $region40
        $region39: #{tpu_custom_call.1} parent=27 // pred_region
          %225 = vst [vmem:[#allocation2] sm:$0xff] 0.0
          %226 = vst [vmem:[#allocation2 + $0x8] sm:$0xff] 0.0
          %227 = vst [vmem:[#allocation2 + $0x10] sm:$0xff] 0.0
          %228 = vst [vmem:[#allocation2 + $0x18] sm:$0xff] 0.0
          %229 = vst [vmem:[#allocation2 + $0x20] sm:$0xff] 0.0
          %230 = vst [vmem:[#allocation2 + $0x28] sm:$0xff] 0.0
          %231 = vst [vmem:[#allocation2 + $0x30] sm:$0xff] 0.0
          %232 = vst [vmem:[#allocation2 + $0x38] sm:$0xff] 0.0
          %233 = vst [vmem:[#allocation2 + $0x40] sm:$0xff] 0.0
          %234 = vst [vmem:[#allocation2 + $0x48] sm:$0xff] 0.0
          %235 = vst [vmem:[#allocation2 + $0x50] sm:$0xff] 0.0
          %236 = vst [vmem:[#allocation2 + $0x58] sm:$0xff] 0.0
          %237 = vst [vmem:[#allocation2 + $0x60] sm:$0xff] 0.0
          %238 = vst [vmem:[#allocation2 + $0x68] sm:$0xff] 0.0
          %239 = vst [vmem:[#allocation2 + $0x70] sm:$0xff] 0.0
          %240 = vst [vmem:[#allocation2 + $0x78] sm:$0xff] 0.0
        $region40: #{tpu_custom_call.1} parent=27 // pred_fallthru
          _
        %v241 = vld [vmem:[#allocation2] sm:$0xff]
        %v242 = vld [vmem:[#allocation2 + $0x8] sm:$0xff]
        %v243 = vld [vmem:[#allocation2 + $0x10] sm:$0xff]
        %v244 = vld [vmem:[#allocation2 + $0x18] sm:$0xff]
        %v245 = vld [vmem:[#allocation2 + $0x20] sm:$0xff]
        %v246 = vld [vmem:[#allocation2 + $0x28] sm:$0xff]
        %v247 = vld [vmem:[#allocation2 + $0x30] sm:$0xff]
        %v248 = vld [vmem:[#allocation2 + $0x38] sm:$0xff]
        %v249 = vld [vmem:[#allocation2 + $0x40] sm:$0xff]
        %v250 = vld [vmem:[#allocation2 + $0x48] sm:$0xff]
        %v251 = vld [vmem:[#allocation2 + $0x50] sm:$0xff]
        %v252 = vld [vmem:[#allocation2 + $0x58] sm:$0xff]
        %v253 = vld [vmem:[#allocation2 + $0x60] sm:$0xff]
        %v254 = vld [vmem:[#allocation2 + $0x68] sm:$0xff]
        %v255 = vld [vmem:[#allocation2 + $0x70] sm:$0xff]
        %v256 = vld [vmem:[#allocation2 + $0x78] sm:$0xff]
        %v257 = vld [vmem:[#allocation3] sm:$0xff]
        %v258 = vld [vmem:[#allocation3 + $0x8] sm:$0xff]
        %v259 = vld [vmem:[#allocation3 + $0x10] sm:$0xff]
        %v260 = vld [vmem:[#allocation3 + $0x18] sm:$0xff]
        %v261 = vld [vmem:[#allocation3 + $0x20] sm:$0xff]
        %v262 = vld [vmem:[#allocation3 + $0x28] sm:$0xff]
        %v263 = vld [vmem:[#allocation3 + $0x30] sm:$0xff]
        %v264 = vld [vmem:[#allocation3 + $0x38] sm:$0xff]
        %v265 = vld [vmem:[#allocation3 + $0x40] sm:$0xff]
        %v266 = vld [vmem:[#allocation3 + $0x48] sm:$0xff]
        %v267 = vld [vmem:[#allocation3 + $0x50] sm:$0xff]
        %v268 = vld [vmem:[#allocation3 + $0x58] sm:$0xff]
        %v269 = vld [vmem:[#allocation3 + $0x60] sm:$0xff]
        %v270 = vld [vmem:[#allocation3 + $0x68] sm:$0xff]
        %v271 = vld [vmem:[#allocation3 + $0x70] sm:$0xff]
        %v272 = vld [vmem:[#allocation3 + $0x78] sm:$0xff]
        %v273 = vld [vmem:[#allocation3 + $0x80] sm:$0xff]
        %v274 = vld [vmem:[#allocation3 + $0x88] sm:$0xff]
        %v275 = vld [vmem:[#allocation3 + $0x90] sm:$0xff]
        %v276 = vld [vmem:[#allocation3 + $0x98] sm:$0xff]
        %v277 = vld [vmem:[#allocation3 + $0xa0] sm:$0xff]
        %v278 = vld [vmem:[#allocation3 + $0xa8] sm:$0xff]
        %v279 = vld [vmem:[#allocation3 + $0xb0] sm:$0xff]
        %v280 = vld [vmem:[#allocation3 + $0xb8] sm:$0xff]
        %v281 = vld [vmem:[#allocation3 + $0xc0] sm:$0xff]
        %v282 = vld [vmem:[#allocation3 + $0xc8] sm:$0xff]
        %v283 = vld [vmem:[#allocation3 + $0xd0] sm:$0xff]
        %v284 = vld [vmem:[#allocation3 + $0xd8] sm:$0xff]
        %v285 = vld [vmem:[#allocation3 + $0xe0] sm:$0xff]
        %v286 = vld [vmem:[#allocation3 + $0xe8] sm:$0xff]
        %v287 = vld [vmem:[#allocation3 + $0xf0] sm:$0xff]
        %v288 = vld [vmem:[#allocation3 + $0xf8] sm:$0xff]
        %v289 = vld [vmem:[%s195] sm:$0xff]
        %v290 = vld [vmem:[%s195 + $0x8] sm:$0xff]
        %v291 = vld [vmem:[%s195 + $0x10] sm:$0xff]
        %v292 = vld [vmem:[%s195 + $0x18] sm:$0xff]
        %v293 = vld [vmem:[%s195 + $0x20] sm:$0xff]
        %v294 = vld [vmem:[%s195 + $0x28] sm:$0xff]
        %v295 = vld [vmem:[%s195 + $0x30] sm:$0xff]
        %v296 = vld [vmem:[%s195 + $0x38] sm:$0xff]
        %v297 = vld [vmem:[%s195 + $0x40] sm:$0xff]
        %v298 = vld [vmem:[%s195 + $0x48] sm:$0xff]
        %v299 = vld [vmem:[%s195 + $0x50] sm:$0xff]
        %v300 = vld [vmem:[%s195 + $0x58] sm:$0xff]
        %v301 = vld [vmem:[%s195 + $0x60] sm:$0xff]
        %v302 = vld [vmem:[%s195 + $0x68] sm:$0xff]
        %v303 = vld [vmem:[%s195 + $0x70] sm:$0xff]
        %v304 = vld [vmem:[%s195 + $0x78] sm:$0xff]
        %v305 = vld [vmem:[%s195 + $0x80] sm:$0xff]
        %v306 = vld [vmem:[%s195 + $0x88] sm:$0xff]
        %v307 = vld [vmem:[%s195 + $0x90] sm:$0xff]
        %v308 = vld [vmem:[%s195 + $0x98] sm:$0xff]
        %v309 = vld [vmem:[%s195 + $0xa0] sm:$0xff]
        %v310 = vld [vmem:[%s195 + $0xa8] sm:$0xff]
        %v311 = vld [vmem:[%s195 + $0xb0] sm:$0xff]
        %v312 = vld [vmem:[%s195 + $0xb8] sm:$0xff]
        %v313 = vld [vmem:[%s195 + $0xc0] sm:$0xff]
        %v314 = vld [vmem:[%s195 + $0xc8] sm:$0xff]
        %v315 = vld [vmem:[%s195 + $0xd0] sm:$0xff]
        %v316 = vld [vmem:[%s195 + $0xd8] sm:$0xff]
        %v317 = vld [vmem:[%s195 + $0xe0] sm:$0xff]
        %v318 = vld [vmem:[%s195 + $0xe8] sm:$0xff]
        %v319 = vld [vmem:[%s195 + $0xf0] sm:$0xff]
        %v320 = vld [vmem:[%s195 + $0xf8] sm:$0xff]
        %321 = vmatprep.subr.mxu0 %v320
        %322 = vmatpush1.xpose.msra.mxu0 %v319
        %323 = vmatprep.subr.mxu0 %v318
        %324 = vmatpush1.xpose.msra.mxu0 %v317
        %325 = vmatprep.subr.mxu0 %v316
        %326 = vmatpush1.xpose.msra.mxu0 %v315
        %327 = vmatprep.subr.mxu0 %v314
        %328 = vmatpush1.xpose.msra.mxu0 %v313
        %329 = vmatprep.subr.mxu0 %v312
        %330 = vmatpush1.xpose.msra.mxu0 %v311
        %331 = vmatprep.subr.mxu0 %v310
        %332 = vmatpush1.xpose.msra.mxu0 %v309
        %333 = vmatprep.subr.mxu0 %v308
        %334 = vmatpush1.xpose.msra.mxu0 %v307
        %335 = vmatprep.subr.mxu0 %v306
        %336 = vmatpush1.xpose.msra.mxu0 %v305
        %337 = vmatprep.subr.mxu0 %v304
        %338 = vmatpush1.xpose.msra.mxu0 %v303
        %339 = vmatprep.subr.mxu0 %v302
        %340 = vmatpush1.xpose.msra.mxu0 %v301
        %341 = vmatprep.subr.mxu0 %v300
        %342 = vmatpush1.xpose.msra.mxu0 %v299
        %343 = vmatprep.subr.mxu0 %v298
        %344 = vmatpush1.xpose.msra.mxu0 %v297
        %345 = vmatprep.subr.mxu0 %v296
        %346 = vmatpush1.xpose.msra.mxu0 %v295
        %347 = vmatprep.subr.mxu0 %v294
        %348 = vmatpush1.xpose.msra.mxu0 %v293
        %349 = vmatprep.subr.mxu0 %v292
        %350 = vmatpush1.xpose.msra.mxu0 %v291
        %351 = vmatprep.subr.mxu0 %v290
        %352 = vmatpush1.xpose.msra.mxu0 %v289
        %353 = vmatprep.subr.mxu0 0.0
        %354 = vmatpush2.xpose.msra.mxu0 0.0
        %355 = vmatprep.subr.mxu0 0.0
        %356 = vmatpush2.xpose.msra.mxu0 0.0
        %357 = vmatprep.subr.mxu0 0.0
        %358 = vmatpush2.xpose.msra.mxu0 0.0
        %359 = vmatprep.subr.mxu0 0.0
        %360 = vmatpush2.xpose.msra.mxu0 0.0
        %361 = vmatprep.subr.mxu0 0.0
        %362 = vmatpush2.xpose.msra.mxu0 0.0
        %363 = vmatprep.subr.mxu0 0.0
        %364 = vmatpush2.xpose.msra.mxu0 0.0
        %365 = vmatprep.subr.mxu0 0.0
        %366 = vmatpush2.xpose.msra.mxu0 0.0
        %367 = vmatprep.subr.mxu0 0.0
        %368 = vmatpush2.xpose.msra.mxu0 0.0
        %369 = vmatprep.subr.mxu0 0.0
        %370 = vmatpush2.xpose.msra.mxu0 0.0
        %371 = vmatprep.subr.mxu0 0.0
        %372 = vmatpush2.xpose.msra.mxu0 0.0
        %373 = vmatprep.subr.mxu0 0.0
        %374 = vmatpush2.xpose.msra.mxu0 0.0
        %375 = vmatprep.subr.mxu0 0.0
        %376 = vmatpush2.xpose.msra.mxu0 0.0
        %377 = vmatprep.subr.mxu0 0.0
        %378 = vmatpush2.xpose.msra.mxu0 0.0
        %379 = vmatprep.subr.mxu0 0.0
        %380 = vmatpush2.xpose.msra.mxu0 0.0
        %381 = vmatprep.subr.mxu0 0.0
        %382 = vmatpush2.xpose.msra.mxu0 0.0
        %383 = vmatprep.subr.mxu0 0.0
        %384 = vmatpush2.xpose.msra.mxu0 0.0
        %385 = vmatprep.mubr.f32.mxu0 %v258
        %386 = vmatmul.mubr.f32.gmra.mxu0 %v257
        %v387 = vpop.f32.mrf.mxu0
        %v388 = vadd.f32 0.0, %v387
        %v389 = vpop.f32.mrf.mxu0
        %390 = vmatprep.mubr.f32.mxu0 %v260
        %391 = vmatmul.mubr.f32.gmra.mxu0 %v259
        %v392 = vpop.f32.mrf.mxu0
        %v393 = vadd.f32 0.0, %v392
        %v394 = vpop.f32.mrf.mxu0
        %395 = vmatprep.mubr.f32.mxu0 %v262
        %396 = vmatmul.mubr.f32.gmra.mxu0 %v261
        %v397 = vpop.f32.mrf.mxu0
        %v398 = vadd.f32 0.0, %v397
        %v399 = vpop.f32.mrf.mxu0
        %400 = vmatprep.mubr.f32.mxu0 %v264
        %401 = vmatmul.mubr.f32.gmra.mxu0 %v263
        %v402 = vpop.f32.mrf.mxu0
        %v403 = vadd.f32 0.0, %v402
        %v404 = vpop.f32.mrf.mxu0
        %405 = vmatprep.mubr.f32.mxu0 %v266
        %406 = vmatmul.mubr.f32.gmra.mxu0 %v265
        %v407 = vpop.f32.mrf.mxu0
        %v408 = vadd.f32 0.0, %v407
        %v409 = vpop.f32.mrf.mxu0
        %410 = vmatprep.mubr.f32.mxu0 %v268
        %411 = vmatmul.mubr.f32.gmra.mxu0 %v267
        %v412 = vpop.f32.mrf.mxu0
        %v413 = vadd.f32 0.0, %v412
        %v414 = vpop.f32.mrf.mxu0
        %415 = vmatprep.mubr.f32.mxu0 %v270
        %416 = vmatmul.mubr.f32.gmra.mxu0 %v269
        %v417 = vpop.f32.mrf.mxu0
        %v418 = vadd.f32 0.0, %v417
        %v419 = vpop.f32.mrf.mxu0
        %420 = vmatprep.mubr.f32.mxu0 %v272
        %421 = vmatmul.mubr.f32.gmra.mxu0 %v271
        %v422 = vpop.f32.mrf.mxu0
        %v423 = vadd.f32 0.0, %v422
        %v424 = vpop.f32.mrf.mxu0
        %425 = vmatprep.mubr.f32.mxu0 %v274
        %426 = vmatmul.mubr.f32.gmra.mxu0 %v273
        %v427 = vpop.f32.mrf.mxu0
        %v428 = vadd.f32 0.0, %v427
        %v429 = vpop.f32.mrf.mxu0
        %430 = vmatprep.mubr.f32.mxu0 %v276
        %431 = vmatmul.mubr.f32.gmra.mxu0 %v275
        %v432 = vpop.f32.mrf.mxu0
        %v433 = vadd.f32 0.0, %v432
        %v434 = vpop.f32.mrf.mxu0
        %435 = vmatprep.mubr.f32.mxu0 %v278
        %436 = vmatmul.mubr.f32.gmra.mxu0 %v277
        %v437 = vpop.f32.mrf.mxu0
        %v438 = vadd.f32 0.0, %v437
        %v439 = vpop.f32.mrf.mxu0
        %440 = vmatprep.mubr.f32.mxu0 %v280
        %441 = vmatmul.mubr.f32.gmra.mxu0 %v279
        %v442 = vpop.f32.mrf.mxu0
        %v443 = vadd.f32 0.0, %v442
        %v444 = vpop.f32.mrf.mxu0
        %445 = vmatprep.mubr.f32.mxu0 %v282
        %446 = vmatmul.mubr.f32.gmra.mxu0 %v281
        %v447 = vpop.f32.mrf.mxu0
        %v448 = vadd.f32 0.0, %v447
        %v449 = vpop.f32.mrf.mxu0
        %450 = vmatprep.mubr.f32.mxu0 %v284
        %451 = vmatmul.mubr.f32.gmra.mxu0 %v283
        %v452 = vpop.f32.mrf.mxu0
        %v453 = vadd.f32 0.0, %v452
        %v454 = vpop.f32.mrf.mxu0
        %455 = vmatprep.mubr.f32.mxu0 %v286
        %456 = vmatmul.mubr.f32.gmra.mxu0 %v285
        %v457 = vpop.f32.mrf.mxu0
        %v458 = vadd.f32 0.0, %v457
        %v459 = vpop.f32.mrf.mxu0
        %460 = vmatprep.mubr.f32.mxu0 %v288
        %461 = vmatmul.mubr.f32.gmra.mxu0 %v287
        %v462 = vpop.f32.mrf.mxu0
        %v463 = vadd.f32 0.0, %v462
        %v464 = vpop.f32.mrf.mxu0
        %465 = vdwg.mxu0
        %v466 = vadd.f32 %v241, %v388
        %v467 = vadd.f32 %v242, %v393
        %v468 = vadd.f32 %v243, %v398
        %v469 = vadd.f32 %v244, %v403
        %v470 = vadd.f32 %v245, %v408
        %v471 = vadd.f32 %v246, %v413
        %v472 = vadd.f32 %v247, %v418
        %v473 = vadd.f32 %v248, %v423
        %v474 = vadd.f32 %v249, %v428
        %v475 = vadd.f32 %v250, %v433
        %v476 = vadd.f32 %v251, %v438
        %v477 = vadd.f32 %v252, %v443
        %v478 = vadd.f32 %v253, %v448
        %v479 = vadd.f32 %v254, %v453
        %v480 = vadd.f32 %v255, %v458
        %v481 = vadd.f32 %v256, %v463
        %482 = vst [vmem:[#allocation2] sm:$0xff] %v466
        %483 = vst [vmem:[#allocation2 + $0x8] sm:$0xff] %v467
        %484 = vst [vmem:[#allocation2 + $0x10] sm:$0xff] %v468
        %485 = vst [vmem:[#allocation2 + $0x18] sm:$0xff] %v469
        %486 = vst [vmem:[#allocation2 + $0x20] sm:$0xff] %v470
        %487 = vst [vmem:[#allocation2 + $0x28] sm:$0xff] %v471
        %488 = vst [vmem:[#allocation2 + $0x30] sm:$0xff] %v472
        %489 = vst [vmem:[#allocation2 + $0x38] sm:$0xff] %v473
        %490 = vst [vmem:[#allocation2 + $0x40] sm:$0xff] %v474
        %491 = vst [vmem:[#allocation2 + $0x48] sm:$0xff] %v475
        %492 = vst [vmem:[#allocation2 + $0x50] sm:$0xff] %v476
        %493 = vst [vmem:[#allocation2 + $0x58] sm:$0xff] %v477
        %494 = vst [vmem:[#allocation2 + $0x60] sm:$0xff] %v478
        %495 = vst [vmem:[#allocation2 + $0x68] sm:$0xff] %v479
        %496 = vst [vmem:[#allocation2 + $0x70] sm:$0xff] %v480
        %497 = vst [vmem:[#allocation2 + $0x78] sm:$0xff] %v481
        // Predicated region
        $region41: #{tpu_custom_call.1} parent=27 // pred_check
          %p498 = pneg %p221
        $region42: #{tpu_custom_call.1} parent=27 // pred_check_branch
          %500 = sbr.rel (%p498) target = $region44
        $region43: #{tpu_custom_call.1} parent=27 // pred_region
          %v501 = vld [vmem:[#allocation2] sm:$0xff]
          %v502 = vld [vmem:[#allocation2 + $0x8] sm:$0xff]
          %v503 = vld [vmem:[#allocation2 + $0x10] sm:$0xff]
          %v504 = vld [vmem:[#allocation2 + $0x18] sm:$0xff]
          %v505 = vld [vmem:[#allocation2 + $0x20] sm:$0xff]
          %v506 = vld [vmem:[#allocation2 + $0x28] sm:$0xff]
          %v507 = vld [vmem:[#allocation2 + $0x30] sm:$0xff]
          %v508 = vld [vmem:[#allocation2 + $0x38] sm:$0xff]
          %v509 = vld [vmem:[#allocation2 + $0x40] sm:$0xff]
          %v510 = vld [vmem:[#allocation2 + $0x48] sm:$0xff]
          %v511 = vld [vmem:[#allocation2 + $0x50] sm:$0xff]
          %v512 = vld [vmem:[#allocation2 + $0x58] sm:$0xff]
          %v513 = vld [vmem:[#allocation2 + $0x60] sm:$0xff]
          %v514 = vld [vmem:[#allocation2 + $0x68] sm:$0xff]
          %v515 = vld [vmem:[#allocation2 + $0x70] sm:$0xff]
          %v516 = vld [vmem:[#allocation2 + $0x78] sm:$0xff]
          %517 = vst [vmem:[%s215] sm:$0xff] %v501
          %518 = vst [vmem:[%s215 + $0x8] sm:$0xff] %v502
          %519 = vst [vmem:[%s215 + $0x10] sm:$0xff] %v503
          %520 = vst [vmem:[%s215 + $0x18] sm:$0xff] %v504
          %521 = vst [vmem:[%s215 + $0x20] sm:$0xff] %v505
          %522 = vst [vmem:[%s215 + $0x28] sm:$0xff] %v506
          %523 = vst [vmem:[%s215 + $0x30] sm:$0xff] %v507
          %524 = vst [vmem:[%s215 + $0x38] sm:$0xff] %v508
          %525 = vst [vmem:[%s215 + $0x40] sm:$0xff] %v509
          %526 = vst [vmem:[%s215 + $0x48] sm:$0xff] %v510
          %527 = vst [vmem:[%s215 + $0x50] sm:$0xff] %v511
          %528 = vst [vmem:[%s215 + $0x58] sm:$0xff] %v512
          %529 = vst [vmem:[%s215 + $0x60] sm:$0xff] %v513
          %530 = vst [vmem:[%s215 + $0x68] sm:$0xff] %v514
          %531 = vst [vmem:[%s215 + $0x70] sm:$0xff] %v515
          %532 = vst [vmem:[%s215 + $0x78] sm:$0xff] %v516
        $region44: #{tpu_custom_call.1} parent=27 // pred_fallthru
          _
        %s533 = sand.u32 %s105, 1
        %s534 = scalar_lea.sflag [#allocation5], %s533
        %s535 = sand.u32 %s105, 1
        %s536 = smul.addr %s535, 128
        %s537 = scalar_lea.vmem [#allocation8], %s536
        // Predicated region
        $region45: #{tpu_custom_call.1} parent=27 // pred_check
          %p538 = pneg %p115
        $region46: #{tpu_custom_call.1} parent=27 // pred_check_branch
          %540 = sbr.rel (%p538) target = $region48
        $region47: #{tpu_custom_call.1} parent=27 // pred_region
          %s541 = smul.u32 16, %s25
          %s543 = ssub.s32 2048, 2048
          %544 = vsyncadd %s534, %s543
          %s545 = smul.addr %s541, 3
          %s546 = sadd.s32 %s26, %s545
          %s547 = smul.addr %s546, 128
          %s548 = scalar_lea.hbm %s2, %s547
          %s549 = sshll.u32 %s537, 4
          %s550 = int_to_ptr.vmem [resolvable:$true] %s549
          %555 = dma.vmem_to_hbm [thread:$0]  %s550, 2048, %s548, %s534, 128, 384, 8
        $region48: #{tpu_custom_call.1} parent=27 // pred_fallthru
          _
      $region28: #{tpu_custom_call.1} parent=5 // pred_fallthru
        _
      %p556 = scmp.le.s32.totalorder 2, %s15
      // Predicated region
      $region49: #{tpu_custom_call.1} parent=5 // pred_check
        %p557 = pneg %p556
      $region50: #{tpu_custom_call.1} parent=5 // pred_check_branch
        %559 = sbr.rel (%p557) target = $region52
      $region51: #{tpu_custom_call.1} parent=5 // pred_region
        %s560 = ssub.s32 %s15, 2
        // Predicated region
        $region53: #{tpu_custom_call.1} parent=51 // pred_check
          %p561 = pneg %p121
        $region54: #{tpu_custom_call.1} parent=51 // pred_check_branch
          %563 = sbr.rel (%p561) target = $region56
        $region55: #{tpu_custom_call.1} parent=51 // pred_region
          %s564 = sand.u32 %s106, 1
          %s565 = scalar_lea.sflag [#allocation5], %s564
          %s566 = sand.u32 %s106, 1
          %s567 = smul.addr %s566, 128
          %s568 = scalar_lea.vmem [#allocation8], %s567
          %569 = dma.done %s565, 2048
        $region56: #{tpu_custom_call.1} parent=51 // pred_fallthru
          _
      $region52: #{tpu_custom_call.1} parent=5 // pred_fallthru
        _
    $region6: #{tpu_custom_call.1} parent=1 // loop_footer
      %s19 = sadd.s32 1, %s15
    $region7: #{tpu_custom_call.1} parent=1 // loop_footer_branch
      %14 = sbr.rel target = $region3
    $region8: #{tpu_custom_call.1} parent=1 // loop_exit
      _
    %570 = vsyncpa [#allocation4], 1
    %s571 = scalar_lea.sflag [#allocation4], 1
    %572 = vsyncpa %s571, 1
    %573 = vsyncpa [#allocation7], 1
    %s574 = scalar_lea.sflag [#allocation7], 1
    %575 = vsyncpa %s574, 1
    %576 = vsyncpa [#allocation5], 1
    %s577 = scalar_lea.sflag [#allocation5], 1
    %578 = vsyncpa %s577, 1

</llo_original>
